<compile_context>
chip_gen: v7x
topology: tpu7x:2x2x1
jax: 0.10.0
libtpu: 0.0.40
codegen_flags: <defaults>
</compile_context>

<pallas_src>
import jax
import jax.numpy as jnp
from jax import lax
from jax.experimental import pallas as pl
from jax.experimental.pallas import tpu as pltpu

QDIM = 128  # dsmil hard-codes the query dimension to 128


# --------------------------------------------------------------------------
# Helpers
# --------------------------------------------------------------------------
def _round_up(x, m):
    return (x + m - 1) // m * m


def _vmem_limit_bytes():
    """~7/8 of physical VMEM (v5e/v6e: 128 MiB, v7x: 64 MiB per TC)."""
    try:
        cap = int(pltpu.get_tpu_info().vmem_capacity_bytes)
    except Exception:  # non-TPU tracing / older API: conservative fallback
        cap = 64 << 20
    return cap * 7 // 8


def _choose_tm(n, per_row_bytes, fixed_bytes, vmem_limit, requested=None):
    """Pick a row tile so double-buffered inputs/outputs + weights fit VMEM."""
    if requested is None:
        budget = max(vmem_limit // 2 - fixed_bytes, per_row_bytes * 128)
        requested = min(max(budget // per_row_bytes, 128), 2048)
    tm = min(int(requested), _round_up(n, 8))
    return max(_round_up(tm, 8), 8)


# --------------------------------------------------------------------------
# Kernels
# --------------------------------------------------------------------------
def _instance_kernel(x_ref, w1c_ref, b1c_ref, w2_ref, b2_ref, c_ref, q_ref):
    """One row tile: [h | scores] = x @ [W1.T | Wc.T] + [b1 | bc] in a single
    MXU pass over the K contraction, then Q = tanh(relu(h) @ W2.T + b2)."""
    x = x_ref[...]
    fused = jnp.dot(x, w1c_ref[...],
                    preferred_element_type=jnp.float32) + b1c_ref[...]
    # Patch scores: (tm, C) store. TODO(synk): emit as (C, N) lane-dense if the
    # 2-lane masked stores ever dominate the store slot in the bundle.
    c_ref[...] = fused[:, QDIM:].astype(c_ref.dtype)
    h = jnp.maximum(fused[:, :QDIM], 0.0)
    q = jnp.dot(h, w2_ref[...], preferred_element_type=jnp.float32) + b2_ref[...]
    q_ref[...] = jnp.tanh(q).astype(q_ref.dtype)


def _make_bag_kernel(n_rows, tm, tiles_per_split, c_cls):
    """B = A.T @ feats accumulated over row tiles with in-kernel row masking."""

    def kernel(a_ref, x_ref, b_ref):
        i = pl.program_id(1)

        @pl.when(i == 0)
        def _():
            b_ref[...] = jnp.zeros_like(b_ref)

        # Global row-tile index (leading 'parallel' axis splits the row range
        # across TensorCores on v7x). Mask rows beyond the true N so ragged
        # and overhang tiles contribute exactly zero (no padded HBM copies,
        # and stale/NaN garbage in the ragged block cannot reach the
        # accumulator).
        t = pl.program_id(0) * tiles_per_split + i
        row0 = t * tm
        row_ids = lax.broadcasted_iota(jnp.int32, (tm, 1), 0)
        valid = row_ids < (n_rows - row0)
        a = jnp.where(valid, a_ref[...].astype(jnp.float32), 0.0)
        x = jnp.where(valid, x_ref[...].astype(jnp.float32), 0.0)

        # C is tiny: per-class VPU multiply + sublane reduce beats a C-wide
        # MXU matmul; batch all classes into ONE accumulator update per tile.
        partial = jnp.concatenate(
            [jnp.sum(a[:, cls:cls + 1] * x, axis=0, keepdims=True)
             for cls in range(c_cls)], axis=0)                    # (C, K)
        b_ref[...] += partial

    return kernel


# --------------------------------------------------------------------------
# Wrappers
# --------------------------------------------------------------------------
def instance_forward(feats, w1c_t, b1c, w2_t, b2, c_cls, *, tm=None):
    """Fused patch classifier + query projection; single HBM pass over feats.

    w1c_t: (K, QDIM+C) pre-transposed concat [W1.T | Wc.T]
    b1c:   (1, QDIM+C) concat [b1 | bc]
    w2_t:  (QDIM, QDIM) pre-transposed W2.T ;  b2: (1, QDIM)
    """
    n, k = feats.shape
    x_bytes = feats.dtype.itemsize
    vmem_limit = _vmem_limit_bytes()
    weight_bytes = 2 * 4 * (k * (QDIM + c_cls) + QDIM * QDIM + 2 * QDIM + c_cls)
    per_row = 2 * (k * x_bytes + QDIM * x_bytes + c_cls * 4)
    tm = _choose_tm(n, per_row, weight_bytes, vmem_limit, tm)
    grid = (pl.cdiv(n, tm),)

    flops = 2 * n * k * (QDIM + c_cls) + 2 * n * QDIM * QDIM
    bytes_accessed = (n * k * x_bytes + n * QDIM * x_bytes + n * c_cls * 4
                      + 4 * (k * (QDIM + c_cls) + QDIM * QDIM + QDIM + c_cls + QDIM))

    c_out, q_out = pl.pallas_call(
        _instance_kernel,
        out_shape=(jax.ShapeDtypeStruct((n, c_cls), jnp.float32),
                   jax.ShapeDtypeStruct((n, QDIM), feats.dtype)),
        grid=grid,
        in_specs=[
            pl.BlockSpec((tm, k), lambda i: (i, 0)),               # feats tile
            pl.BlockSpec((k, QDIM + c_cls), lambda i: (0, 0)),     # [W1.T|Wc.T]
            pl.BlockSpec((1, QDIM + c_cls), lambda i: (0, 0)),     # [b1|bc]
            pl.BlockSpec((QDIM, QDIM), lambda i: (0, 0)),          # W2.T
            pl.BlockSpec((1, QDIM), lambda i: (0, 0)),             # b2
        ],
        out_specs=(pl.BlockSpec((tm, c_cls), lambda i: (i, 0)),
                   pl.BlockSpec((tm, QDIM), lambda i: (i, 0))),
        compiler_params=pltpu.CompilerParams(
            dimension_semantics=("parallel",),
            vmem_limit_bytes=vmem_limit),
        cost_estimate=pl.CostEstimate(flops=flops,
                                      transcendentals=n * QDIM,
                                      bytes_accessed=bytes_accessed),
    )(feats, w1c_t, b1c, w2_t, b2)
    return c_out, q_out


def bag_forward(attn, feats, *, tm=None, n_splits=2):
    """B = A.T @ feats streamed over row tiles with resident f32 accumulators.

    A leading 'parallel' grid axis splits the row range so both v7x
    TensorCores participate; the (n_splits, C, K) partials are summed in XLA.
    """
    n, k = feats.shape
    c_cls = attn.shape[1]
    x_bytes = feats.dtype.itemsize
    vmem_limit = _vmem_limit_bytes()
    per_row = 2 * (k * x_bytes + c_cls * 4)
    tm = _choose_tm(n, per_row, 8 * c_cls * k, vmem_limit, tm)

    num_tiles = pl.cdiv(n, tm)
    n_splits = max(min(int(n_splits), num_tiles), 1)
    tiles_per_split = pl.cdiv(num_tiles, n_splits)
    last_tile = num_tiles - 1

    def tile_index(s, i):
        # Clamp overhang tiles (num_tiles not divisible by n_splits) to a valid
        # block; the in-kernel row mask zeroes their contribution.
        return jnp.minimum(s * tiles_per_split + i, last_tile)

    partials = pl.pallas_call(
        _make_bag_kernel(n, tm, tiles_per_split, c_cls),
        out_shape=jax.ShapeDtypeStruct((n_splits, c_cls, k), jnp.float32),
        grid=(n_splits, tiles_per_split),
        in_specs=[pl.BlockSpec((tm, c_cls), lambda s, i: (tile_index(s, i), 0)),
                  pl.BlockSpec((tm, k), lambda s, i: (tile_index(s, i), 0))],
        out_specs=pl.BlockSpec((None, c_cls, k), lambda s, i: (s, 0, 0)),
        compiler_params=pltpu.CompilerParams(
            dimension_semantics=("parallel", "arbitrary"),
            vmem_limit_bytes=vmem_limit),
        cost_estimate=pl.CostEstimate(
            flops=2 * n * c_cls * k, transcendentals=0,
            bytes_accessed=n * (c_cls * 4 + k * x_bytes) + 4 * n_splits * c_cls * k),
    )(attn.astype(jnp.float32), feats)
    return partials.sum(axis=0)                                     # (C, K) f32


def milnet_forward(features, params, *, tm=None, stream_dtype=None):
    """MILNet.forward(features, _) -> (patch_preds, bag_pred, A, B).

    stream_dtype=jnp.bfloat16 halves feats/q HBM traffic (f32 accumulation and
    f32 B / scores kept); default None preserves PyTorch f32 numerics.
    """
    feats = features if stream_dtype is None else features.astype(stream_dtype)
    c_cls = params["wc"].shape[0]

    # One-time wrapper-side weight prep: transpose to (K, out) so the MXU
    # contraction is canonical, and concatenate [W1.T | Wc.T] so the patch
    # scores share the query projection's MXU pass over K.
    w1c_t = jnp.concatenate([params["w1"].T, params["wc"].T], axis=1)
    b1c = jnp.concatenate([params["b1"], params["bc"]]).reshape(1, -1)
    w2_t = params["w2"].T
    b2 = params["b2"].reshape(1, -1)

    # Pallas pass 1: patch scores + 128-wide queries, one pass over feats.
    c, q = instance_forward(feats, w1c_t, b1c, w2_t, b2, c_cls, tm=tm)

    # Critical-instance selection (torch.sort desc row 0 == per-class argmax)
    # and the tiny (C, 128) q_max projection stay in XLA (data-dependent, tiny).
    m_idx = jnp.argmax(c, axis=0)                                     # (C,)
    m_feats = feats[m_idx].astype(jnp.float32)                        # (C, K)
    h = jnp.maximum(m_feats @ params["w1"].T + params["b1"], 0.0)
    q_max = jnp.tanh(h @ params["w2"].T + params["b2"])               # (C, 128)

    # TODO(synk): fold logits + online softmax + B into the bag kernel
    # (flash-style) to avoid re-reading q from HBM when N is very large.
    logits = (q.astype(jnp.float32) @ q_max.T) / jnp.sqrt(jnp.float32(QDIM))
    attn = jax.nn.softmax(logits, axis=0)                             # (N, C)

    # Pallas pass 2: bag representation B = A.T @ feats.
    bag_rep = bag_forward(attn, feats, tm=tm)                         # (C, K) f32

    # nn.Conv1d(C, C, kernel_size=K) on a (1, C, K) input == full contraction.
    pred_bag = (jnp.einsum("ock,ck->o", params["w_fcc"], bag_rep)
                + params["b_fcc"]).reshape(1, -1)                     # (1, C)

    return c, pred_bag, attn, bag_rep


# --------------------------------------------------------------------------
# Pure-JAX reference (mirrors the PyTorch module exactly)
# --------------------------------------------------------------------------
def _reference(features, p):
    feats = features
    c = feats @ p["wc"].T + p["bc"]

    def qnet(x):
        h = jnp.maximum(x @ p["w1"].T + p["b1"], 0.0)
        return jnp.tanh(h @ p["w2"].T + p["b2"])

    q = qnet(feats)
    m_idx = jnp.argmax(c, axis=0)
    q_max = qnet(feats[m_idx])
    attn = jax.nn.softmax((q @ q_max.T) / jnp.sqrt(jnp.float32(QDIM)), axis=0)
    b = attn.T @ feats
    pred = (jnp.einsum("ock,ck->o", p["w_fcc"], b) + p["b_fcc"]).reshape(1, -1)
    return c, pred, attn, b


if __name__ == "__main__":
    # Small bag: N instances of K-dim features, C classes.
    N, K, C = 200, 256, 2

    key = jax.random.PRNGKey(0)
    keys = jax.random.split(key, 9)
    features = jax.random.normal(keys[0], (N, K), dtype=jnp.float32)

    def linear_init(kw, kb, out_dim, in_dim):
        bound = 1.0 / (in_dim ** 0.5)
        w = jax.random.uniform(kw, (out_dim, in_dim), jnp.float32, -bound, bound)
        b = jax.random.uniform(kb, (out_dim,), jnp.float32, -bound, bound)
        return w, b

    wc, bc = linear_init(keys[1], keys[2], C, K)        # FCLayer / IClassifier fc
    w1, b1 = linear_init(keys[3], keys[4], QDIM, K)     # BClassifier q[0]
    w2, b2 = linear_init(keys[5], keys[6], QDIM, QDIM)  # BClassifier q[2]
    bound = 1.0 / ((C * K) ** 0.5)
    w_fcc = jax.random.uniform(keys[7], (C, C, K), jnp.float32, -bound, bound)
    b_fcc = jax.random.uniform(keys[8], (C,), jnp.float32, -bound, bound)

    params = dict(wc=wc, bc=bc, w1=w1, b1=b1, w2=w2, b2=b2,
                  w_fcc=w_fcc, b_fcc=b_fcc)

    names = ("patch_predictions", "prediction_bag",
             "attention_weights", "bag_representations")
    refs = _reference(features, params)

    # tm=64 exercises the ragged multi-tile path (200 = 3*64 + 8 rows) and the
    # two-way core split of the bag kernel.
    outs = milnet_forward(features, params, tm=64)
    jax.block_until_ready(outs)
    for name, got, want in zip(names, outs, refs):
        assert got.shape == want.shape, (name, got.shape, want.shape)
        # Tolerance absorbs MXU default-precision differences vs the XLA dot.
        assert jnp.allclose(got, want, rtol=1e-2, atol=1e-2), name

    # Automatic VMEM-budgeted tile sizing (single tile at this small size).
    outs_auto = milnet_forward(features, params)
    jax.block_until_ready(outs_auto)
    for name, got, want in zip(names, outs_auto, refs):
        assert jnp.allclose(got, want, rtol=1e-2, atol=1e-2), name

    # bf16 streaming path: compare against a reference fed the same bf16-cast
    # features (f32 accumulation throughout), generous tolerance.
    refs_bf16 = _reference(features.astype(jnp.bfloat16).astype(jnp.float32),
                           params)
    outs_bf16 = milnet_forward(features, params, tm=64,
                               stream_dtype=jnp.bfloat16)
    jax.block_until_ready(outs_bf16)
    for name, got, want in zip(names, outs_bf16, refs_bf16):
        assert got.shape == want.shape, (name, got.shape, want.shape)
        assert jnp.allclose(jnp.asarray(got, jnp.float32), want,
                            rtol=5e-2, atol=5e-2), name

    patch_pred, bag_pred, attn_w, bag_rep = outs
    assert patch_pred.shape == (N, C)
    assert bag_pred.shape == (1, C)
    assert attn_w.shape == (N, C)
    assert bag_rep.shape == (C, K)

    print("KERNEL_OK")
</pallas_src>

<mosaic_0001>
module attributes {stable_mosaic.version = 11 : i64} {
  func.func @_instance_kernel(%arg0: i32, %arg1: memref<64x256xf32, #tpu.memory_space<vmem>>, %arg2: memref<256x130xf32, #tpu.memory_space<vmem>>, %arg3: memref<1x130xf32, #tpu.memory_space<vmem>>, %arg4: memref<128x128xf32, #tpu.memory_space<vmem>>, %arg5: memref<1x128xf32, #tpu.memory_space<vmem>>, %arg6: memref<64x2xf32, #tpu.memory_space<vmem>>, %arg7: memref<64x128xf32, #tpu.memory_space<vmem>>) attributes {dimension_semantics = [#tpu.dimension_semantics<parallel>], iteration_bounds = array<i64: 4>, scalar_prefetch = 0 : i64, scratch_operands = 0 : i64, tpu.core_type = #tpu.core_type<tc>, window_params = [{transform_indices = @transform_0, window_bounds = array<i64: 64, 256>}, {pipeline_mode = #tpu.pipeline_mode<synchronous>, transform_indices = @transform_1, window_bounds = array<i64: 256, 130>}, {pipeline_mode = #tpu.pipeline_mode<synchronous>, transform_indices = @transform_2, window_bounds = array<i64: 1, 130>}, {pipeline_mode = #tpu.pipeline_mode<synchronous>, transform_indices = @transform_3, window_bounds = array<i64: 128, 128>}, {pipeline_mode = #tpu.pipeline_mode<synchronous>, transform_indices = @transform_4, window_bounds = array<i64: 1, 128>}, {transform_indices = @transform_5, window_bounds = array<i64: 64, 2>}, {transform_indices = @transform_6, window_bounds = array<i64: 64, 128>}]} {
    %c0 = arith.constant 0 : index
    %c0_0 = arith.constant 0 : index
    %0 = vector.load %arg1[%c0, %c0_0] : memref<64x256xf32, #tpu.memory_space<vmem>>, vector<64x256xf32>
    %c0_1 = arith.constant 0 : index
    %c0_2 = arith.constant 0 : index
    %1 = vector.load %arg2[%c0_1, %c0_2] : memref<256x130xf32, #tpu.memory_space<vmem>>, vector<256x130xf32>
    %cst = arith.constant dense<0.000000e+00> : vector<64x130xf32>
    %2 = tpu.matmul %0, %1, %cst {dimension_numbers = #tpu.dot_dimension_numbers<[1], [0], [0], [1], [0, 0, 1, 1], [], []>} : vector<64x256xf32>, vector<256x130xf32>, vector<64x130xf32> -> vector<64x130xf32>
    %c0_3 = arith.constant 0 : index
    %c0_4 = arith.constant 0 : index
    %3 = vector.load %arg3[%c0_3, %c0_4] : memref<1x130xf32, #tpu.memory_space<vmem>>, vector<1x130xf32>
    %4 = vector.broadcast %3 : vector<1x130xf32> to vector<64x130xf32>
    %5 = arith.addf %2, %4 : vector<64x130xf32>
    %6 = vector.extract_strided_slice %5 {offsets = [0, 128], sizes = [64, 2], strides = [1, 1]} : vector<64x130xf32> to vector<64x2xf32>
    %c0_5 = arith.constant 0 : index
    %c0_6 = arith.constant 0 : index
    %7 = vector.load %arg6[%c0_5, %c0_6] : memref<64x2xf32, #tpu.memory_space<vmem>>, vector<64x2xf32>
    tpu.vector_store %arg6[%c0_5, %c0_6], %6 {strides = array<i32>} : memref<64x2xf32, #tpu.memory_space<vmem>>, vector<64x2xf32>,
    %8 = vector.extract_strided_slice %5 {offsets = [0, 0], sizes = [64, 128], strides = [1, 1]} : vector<64x130xf32> to vector<64x128xf32>
    %cst_7 = arith.constant 0.000000e+00 : f32
    %9 = vector.broadcast %cst_7 : f32 to vector<64x128xf32>
    %10 = arith.maximumf %8, %9 : vector<64x128xf32>
    %c0_8 = arith.constant 0 : index
    %c0_9 = arith.constant 0 : index
    %11 = vector.load %arg4[%c0_8, %c0_9] : memref<128x128xf32, #tpu.memory_space<vmem>>, vector<128x128xf32>
    %cst_10 = arith.constant dense<0.000000e+00> : vector<64x128xf32>
    %12 = tpu.matmul %10, %11, %cst_10 {dimension_numbers = #tpu.dot_dimension_numbers<[1], [0], [0], [1], [0, 0, 1, 1], [], []>} : vector<64x128xf32>, vector<128x128xf32>, vector<64x128xf32> -> vector<64x128xf32>
    %c0_11 = arith.constant 0 : index
    %c0_12 = arith.constant 0 : index
    %13 = vector.load %arg5[%c0_11, %c0_12] : memref<1x128xf32, #tpu.memory_space<vmem>>, vector<1x128xf32>
    %14 = vector.broadcast %13 : vector<1x128xf32> to vector<64x128xf32>
    %15 = arith.addf %12, %14 : vector<64x128xf32>
    %16 = math.tanh %15 : vector<64x128xf32>
    %c0_13 = arith.constant 0 : index
    %c0_14 = arith.constant 0 : index
    %17 = vector.load %arg7[%c0_13, %c0_14] : memref<64x128xf32, #tpu.memory_space<vmem>>, vector<64x128xf32>
    tpu.vector_store %arg7[%c0_13, %c0_14], %16 {strides = array<i32>} : memref<64x128xf32, #tpu.memory_space<vmem>>, vector<64x128xf32>,
    return
  }
  func.func @transform_0(%arg0: i32) -> (i32, i32) {
    %c0_i32 = arith.constant 0 : i32
    %c0_i32_0 = arith.constant 0 : i32
    return %arg0, %c0_i32 : i32, i32
  }
  func.func @transform_1(%arg0: i32) -> (i32, i32) {
    %c0_i32 = arith.constant 0 : i32
    %c0_i32_0 = arith.constant 0 : i32
    %c0_i32_1 = arith.constant 0 : i32
    return %c0_i32, %c0_i32_0 : i32, i32
  }
  func.func @transform_2(%arg0: i32) -> (i32, i32) {
    %c0_i32 = arith.constant 0 : i32
    %c0_i32_0 = arith.constant 0 : i32
    %c0_i32_1 = arith.constant 0 : i32
    return %c0_i32, %c0_i32_0 : i32, i32
  }
  func.func @transform_3(%arg0: i32) -> (i32, i32) {
    %c0_i32 = arith.constant 0 : i32
    %c0_i32_0 = arith.constant 0 : i32
    %c0_i32_1 = arith.constant 0 : i32
    return %c0_i32, %c0_i32_0 : i32, i32
  }
  func.func @transform_4(%arg0: i32) -> (i32, i32) {
    %c0_i32 = arith.constant 0 : i32
    %c0_i32_0 = arith.constant 0 : i32
    %c0_i32_1 = arith.constant 0 : i32
    return %c0_i32, %c0_i32_0 : i32, i32
  }
  func.func @transform_5(%arg0: i32) -> (i32, i32) {
    %c0_i32 = arith.constant 0 : i32
    %c0_i32_0 = arith.constant 0 : i32
    return %arg0, %c0_i32 : i32, i32
  }
  func.func @transform_6(%arg0: i32) -> (i32, i32) {
    %c0_i32 = arith.constant 0 : i32
    %c0_i32_0 = arith.constant 0 : i32
    return %arg0, %c0_i32 : i32, i32
  }
}

</mosaic_0001>

<llo_original>
// kernel: tpu_custom_call.1
$region0: #{tpu_custom_call.1}
  #allocation0 [shape = 'u32[]', space=smem, size = 0x4, offset = 0x4, fixed_abs, tag = 'smem constant byte address 0x4 - core index']
  #allocation1 [shape = 'u32[144,128]{1,0:T(1,128)}', space=vmem, size = 0x12000, scoped, tag = 'internal scratch']
  %s0 = inlined_call_operand.vmem [shape: f32[200,256], index: 0, kind: input, shape index: {}]
  %s1 = inlined_call_operand.vmem [shape: f32[256,130], index: 1, kind: input, shape index: {}]
  %s2 = inlined_call_operand.vmem [shape: f32[1,130], index: 2, kind: input, shape index: {}]
  %s3 = inlined_call_operand.vmem [shape: f32[128,128], index: 3, kind: input, shape index: {}]
  %s4 = inlined_call_operand.vmem [shape: f32[1,128], index: 4, kind: input, shape index: {}]
  %s5 = inlined_call_operand.vmem [shape: f32[200,2], index: 5, kind: output, shape index: {0}]
  %s6 = inlined_call_operand.hbm [shape: f32[200,128], index: 6, kind: output, shape index: {1}]
  %7 = xla_tuple %s5, %s6
  %s8 = sld [smem:[#allocation0]]
  $region109: #{tpu_custom_call.1} parent=0
    _
  %s10 = ssub.s32 1, %s8
  %s11 = scalar_select 0, %s10, %s8
  $region1: #{tpu_custom_call.1} parent=0
    #allocation2 [shape = 'u8[65536]{0}', space=vmem, size = 0x10000, scoped, tag = 'output window, operand 0']
    #allocation3 [shape = 'u8[65536]{0}', space=vmem, size = 0x10000, scoped, tag = 'output window, operand 1']
    #allocation4 [shape = 's32[2]{0}', space=sflag, size = 0x8, scoped, tag = 'scoped memory for tpu_custom_call.1']
    %12 = vsyncpa [#allocation4], 0
    %s13 = scalar_lea.sflag [#allocation4], 1
    %14 = vsyncpa %s13, 0
    loop: start=0, step=1, limit=6
    $region2: #{tpu_custom_call.1} parent=1 // loop_pre_header
      _
    $region3: #{tpu_custom_call.1} parent=1 // loop_header
      %s16 = sphi 0, %s20
      %p17 = scmp.ge.s32.totalorder %s16, 6
      %s26 = sphi 0, %s28
      %s29 = sphi 0, %s26
      %s30 = sphi 0, %s29
      %s46 = sphi 0, %s30
      %s50 = sphi 0, %s50
      %s52 = sphi 0, %s50
      %s53 = sphi 0, %s52
      %s67 = sphi 0, %s53
      %s71 = sphi 0, %s71
      %s73 = sphi 0, %s71
      %s74 = sphi 0, %s73
      %s88 = sphi 0, %s74
      %s92 = sphi 0, %s92
      %s94 = sphi 0, %s92
      %s95 = sphi 0, %s94
      %s109 = sphi 0, %s95
      %s113 = sphi 0, %s113
      %s115 = sphi 0, %s113
      %s116 = sphi 0, %s115
      %s130 = sphi 0, %s116
      %s136 = sphi 0, %s138
      %s139 = sphi 0, %s136
      %s140 = sphi 0, %s139
      %s156 = sphi 0, %s140
      %s162 = sphi 0, %s164
      %s165 = sphi 0, %s162
      %s166 = sphi 0, %s165
      %s182 = sphi 0, %s166
    $region4: #{tpu_custom_call.1} parent=1 // loop_header_branch
      %19 = sbr.rel (%p17) target = $region8
    $region5: #{tpu_custom_call.1} parent=1 // loop_body
      %s21 = ssub.s32 %s16, 1
      %s22 = ssub.s32 %s16, 2
      %s23 = sadd.s32 %s16, 1
      %s24 = ssub.s32 %s16, %s23
      %p25 = scmp.eq.s32.totalorder %s24, 0
      %s27 = sadd.s32 %s26, 1
      %s28 = scalar_select %p25, %s26, %s27
      %p31 = pneg %p25
      %p32 = scmp.eq.s32.totalorder %s16, 3
      %p33 = por %p31, %p32
      %p34 = scmp.ne.s32.totalorder %s26, %s29
      %p35 = scmp.eq.s32.totalorder %s16, 0
      %p36 = por %p34, %p35
      %p37 = scmp.ne.s32.totalorder %s26, %s29
      %p38 = scmp.eq.s32.totalorder %s21, 3
      %p39 = por %p37, %p38
      %p40 = scmp.ne.s32.totalorder %s29, %s30
      %p41 = scmp.eq.s32.totalorder %s21, 0
      %p42 = por %p40, %p41
      %p43 = scmp.ne.s32.totalorder %s29, %s30
      %p44 = scmp.eq.s32.totalorder %s22, 3
      %p45 = por %p43, %p44
      %p47 = scmp.ne.s32.totalorder %s30, %s46
      %p48 = scmp.eq.s32.totalorder %s22, 0
      %p49 = por %p47, %p48
      %s51 = sadd.s32 %s50, 1
      %p54 = scmp.eq.s32.totalorder %s16, 3
      %p55 = scmp.ne.s32.totalorder %s50, %s52
      %p56 = scmp.eq.s32.totalorder %s16, 0
      %p57 = por %p55, %p56
      %p58 = scmp.ne.s32.totalorder %s50, %s52
      %p59 = scmp.eq.s32.totalorder %s21, 3
      %p60 = por %p58, %p59
      %p61 = scmp.ne.s32.totalorder %s52, %s53
      %p62 = scmp.eq.s32.totalorder %s21, 0
      %p63 = por %p61, %p62
      %p64 = scmp.ne.s32.totalorder %s52, %s53
      %p65 = scmp.eq.s32.totalorder %s22, 3
      %p66 = por %p64, %p65
      %p68 = scmp.ne.s32.totalorder %s53, %s67
      %p69 = scmp.eq.s32.totalorder %s22, 0
      %p70 = por %p68, %p69
      %s72 = sadd.s32 %s71, 1
      %p75 = scmp.eq.s32.totalorder %s16, 3
      %p76 = scmp.ne.s32.totalorder %s71, %s73
      %p77 = scmp.eq.s32.totalorder %s16, 0
      %p78 = por %p76, %p77
      %p79 = scmp.ne.s32.totalorder %s71, %s73
      %p80 = scmp.eq.s32.totalorder %s21, 3
      %p81 = por %p79, %p80
      %p82 = scmp.ne.s32.totalorder %s73, %s74
      %p83 = scmp.eq.s32.totalorder %s21, 0
      %p84 = por %p82, %p83
      %p85 = scmp.ne.s32.totalorder %s73, %s74
      %p86 = scmp.eq.s32.totalorder %s22, 3
      %p87 = por %p85, %p86
      %p89 = scmp.ne.s32.totalorder %s74, %s88
      %p90 = scmp.eq.s32.totalorder %s22, 0
      %p91 = por %p89, %p90
      %s93 = sadd.s32 %s92, 1
      %p96 = scmp.eq.s32.totalorder %s16, 3
      %p97 = scmp.ne.s32.totalorder %s92, %s94
      %p98 = scmp.eq.s32.totalorder %s16, 0
      %p99 = por %p97, %p98
      %p100 = scmp.ne.s32.totalorder %s92, %s94
      %p101 = scmp.eq.s32.totalorder %s21, 3
      %p102 = por %p100, %p101
      %p103 = scmp.ne.s32.totalorder %s94, %s95
      %p104 = scmp.eq.s32.totalorder %s21, 0
      %p105 = por %p103, %p104
      %p106 = scmp.ne.s32.totalorder %s94, %s95
      %p107 = scmp.eq.s32.totalorder %s22, 3
      %p108 = por %p106, %p107
      %p110 = scmp.ne.s32.totalorder %s95, %s109
      %p111 = scmp.eq.s32.totalorder %s22, 0
      %p112 = por %p110, %p111
      %s114 = sadd.s32 %s113, 1
      %p117 = scmp.eq.s32.totalorder %s16, 3
      %p118 = scmp.ne.s32.totalorder %s113, %s115
      %p119 = scmp.eq.s32.totalorder %s16, 0
      %p120 = por %p118, %p119
      %p121 = scmp.ne.s32.totalorder %s113, %s115
      %p122 = scmp.eq.s32.totalorder %s21, 3
      %p123 = por %p121, %p122
      %p124 = scmp.ne.s32.totalorder %s115, %s116
      %p125 = scmp.eq.s32.totalorder %s21, 0
      %p126 = por %p124, %p125
      %p127 = scmp.ne.s32.totalorder %s115, %s116
      %p128 = scmp.eq.s32.totalorder %s22, 3
      %p129 = por %p127, %p128
      %p131 = scmp.ne.s32.totalorder %s116, %s130
      %p132 = scmp.eq.s32.totalorder %s22, 0
      %p133 = por %p131, %p132
      %s134 = ssub.s32 %s16, %s23
      %p135 = scmp.eq.s32.totalorder %s134, 0
      %s137 = sadd.s32 %s136, 1
      %s138 = scalar_select %p135, %s136, %s137
      %p141 = pneg %p135
      %p142 = scmp.eq.s32.totalorder %s16, 3
      %p143 = por %p141, %p142
      %p144 = scmp.ne.s32.totalorder %s136, %s139
      %p145 = scmp.eq.s32.totalorder %s16, 0
      %p146 = por %p144, %p145
      %p147 = scmp.ne.s32.totalorder %s136, %s139
      %p148 = scmp.eq.s32.totalorder %s21, 3
      %p149 = por %p147, %p148
      %p150 = scmp.ne.s32.totalorder %s139, %s140
      %p151 = scmp.eq.s32.totalorder %s21, 0
      %p152 = por %p150, %p151
      %p153 = scmp.ne.s32.totalorder %s139, %s140
      %p154 = scmp.eq.s32.totalorder %s22, 3
      %p155 = por %p153, %p154
      %p157 = scmp.ne.s32.totalorder %s140, %s156
      %p158 = scmp.eq.s32.totalorder %s22, 0
      %p159 = por %p157, %p158
      %s160 = ssub.s32 %s16, %s23
      %p161 = scmp.eq.s32.totalorder %s160, 0
      %s163 = sadd.s32 %s162, 1
      %s164 = scalar_select %p161, %s162, %s163
      %p167 = pneg %p161
      %p168 = scmp.eq.s32.totalorder %s16, 3
      %p169 = por %p167, %p168
      %p170 = scmp.ne.s32.totalorder %s162, %s165
      %p171 = scmp.eq.s32.totalorder %s16, 0
      %p172 = por %p170, %p171
      %p173 = scmp.ne.s32.totalorder %s162, %s165
      %p174 = scmp.eq.s32.totalorder %s21, 3
      %p175 = por %p173, %p174
      %p176 = scmp.ne.s32.totalorder %s165, %s166
      %p177 = scmp.eq.s32.totalorder %s21, 0
      %p178 = por %p176, %p177
      %p179 = scmp.ne.s32.totalorder %s165, %s166
      %p180 = scmp.eq.s32.totalorder %s22, 3
      %p181 = por %p179, %p180
      %p183 = scmp.ne.s32.totalorder %s166, %s182
      %p184 = scmp.eq.s32.totalorder %s22, 0
      %p185 = por %p183, %p184
      %p186 = scmp.le.s32.totalorder 1, %s16
      %p187 = scmp.lt.s32.totalorder %s16, 5
      %p188 = pnand %p186, %p187
      %p189 = pneg %p188
      // Predicated region
      $region9: #{tpu_custom_call.1} parent=5 // pred_check
        _
      $region10: #{tpu_custom_call.1} parent=5 // pred_check_branch
        %191 = sbr.rel (%p188) target = $region12
      $region11: #{tpu_custom_call.1} parent=5 // pred_region
        %s192 = ssub.s32 %s16, 1
        // Predicated region
        $region13: #{tpu_custom_call.1} parent=11 // pred_check
          %p193 = pneg %p63
        $region14: #{tpu_custom_call.1} parent=11 // pred_check_branch
          %195 = sbr.rel (%p193) target = $region16
        $region15: #{tpu_custom_call.1} parent=11 // pred_region
          _
        $region16: #{tpu_custom_call.1} parent=11 // pred_fallthru
          _
        // Predicated region
        $region17: #{tpu_custom_call.1} parent=11 // pred_check
          %p196 = pneg %p84
        $region18: #{tpu_custom_call.1} parent=11 // pred_check_branch
          %198 = sbr.rel (%p196) target = $region20
        $region19: #{tpu_custom_call.1} parent=11 // pred_region
          _
        $region20: #{tpu_custom_call.1} parent=11 // pred_fallthru
          _
        // Predicated region
        $region21: #{tpu_custom_call.1} parent=11 // pred_check
          %p199 = pneg %p105
        $region22: #{tpu_custom_call.1} parent=11 // pred_check_branch
          %201 = sbr.rel (%p199) target = $region24
        $region23: #{tpu_custom_call.1} parent=11 // pred_region
          _
        $region24: #{tpu_custom_call.1} parent=11 // pred_fallthru
          _
        // Predicated region
        $region25: #{tpu_custom_call.1} parent=11 // pred_check
          %p202 = pneg %p126
        $region26: #{tpu_custom_call.1} parent=11 // pred_check_branch
          %204 = sbr.rel (%p202) target = $region28
        $region27: #{tpu_custom_call.1} parent=11 // pred_region
          _
        $region28: #{tpu_custom_call.1} parent=11 // pred_fallthru
          _
      $region12: #{tpu_custom_call.1} parent=5 // pred_fallthru
        _
      %p205 = scmp.lt.s32.totalorder %s16, 4
      // Predicated region
      $region29: #{tpu_custom_call.1} parent=5 // pred_check
        %p206 = pneg %p205
      $region30: #{tpu_custom_call.1} parent=5 // pred_check_branch
        %208 = sbr.rel (%p206) target = $region32
      $region31: #{tpu_custom_call.1} parent=5 // pred_region
        // Predicated region
        $region33: #{tpu_custom_call.1} parent=31 // pred_check
          %p209 = pneg %p36
        $region34: #{tpu_custom_call.1} parent=31 // pred_check_branch
          %211 = sbr.rel (%p209) target = $region36
        $region35: #{tpu_custom_call.1} parent=31 // pred_region
          %s212 = smul.u32 8, %s16
          %s213 = ssub.s32 25, %s212
          %p214 = scmp.lt.s32.totalorder %s213, 8
          %s215 = scalar_select %p214, %s213, 8
          %s216 = smul.u32 128, %s215
          %s217 = smul.u32 %s216, 2
          %p218 = scmp.lt.s32.totalorder %s212, 24
          %s219 = scalar_select %p218, %s212, 24
          %s220 = smul.addr %s219, 2
          %s221 = smul.addr %s220, 8
          %s222 = scalar_lea.vmem %s0, %s221
          %s223 = smul.u32 8, %s16
          %s224 = ssub.s32 25, %s223
          %p225 = scmp.lt.s32.totalorder %s224, 8
          %s226 = scalar_select %p225, %s224, 8
          %s227 = smul.u32 128, %s226
          %s228 = smul.u32 %s227, 2
        $region36: #{tpu_custom_call.1} parent=31 // pred_fallthru
          _
      $region32: #{tpu_custom_call.1} parent=5 // pred_fallthru
        _
      %p229 = scmp.le.s32.totalorder 1, %s16
      %p230 = scmp.lt.s32.totalorder %s16, 5
      %p231 = pnand %p229, %p230
      %p232 = pneg %p231
      // Predicated region
      $region37: #{tpu_custom_call.1} parent=5 // pred_check
        _
      $region38: #{tpu_custom_call.1} parent=5 // pred_check_branch
        %234 = sbr.rel (%p231) target = $region40
      $region39: #{tpu_custom_call.1} parent=5 // pred_region
        %s235 = ssub.s32 %s16, 1
        %s236 = smul.u32 8, %s21
        %s237 = ssub.s32 25, %s236
        %p238 = scmp.lt.s32.totalorder %s237, 8
        %s239 = scalar_select %p238, %s237, 8
        %s240 = smul.u32 128, %s239
        %s241 = smul.u32 %s240, 2
        %p242 = scmp.lt.s32.totalorder %s236, 24
        %s243 = scalar_select %p242, %s236, 24
        %s244 = smul.addr %s243, 2
        %s245 = smul.addr %s244, 8
        %s246 = scalar_lea.vmem %s0, %s245
        %p247 = pneg %p42
        %p248 = pneg %p39
        %p249 = pneg %p63
        %p250 = pneg %p60
        %p251 = pneg %p84
        %p252 = pneg %p81
        %p253 = pneg %p105
        %p254 = pneg %p102
        %p255 = pneg %p126
        %p256 = pneg %p123
        %p257 = pneg %p152
        %p258 = pneg %p149
        %s259 = sand.u32 %s139, 1
        %s260 = sand.u32 %s139, 1
        %s261 = smul.addr %s260, 64
        %s262 = scalar_lea.vmem [#allocation2], %s261
        %p263 = pneg %p178
        %p264 = pneg %p175
        %s265 = sand.u32 %s165, 1
        %s266 = scalar_lea.sflag [#allocation4], %s265
        %s267 = sand.u32 %s165, 1
        %s268 = smul.addr %s267, 64
        %s269 = scalar_lea.vmem [#allocation3], %s268
        %s270 = smul.u32 8, %s21
        %s271 = ssub.s32 25, %s270
        %p272 = scmp.lt.s32.totalorder %s271, 8
        %s273 = scalar_select %p272, %s271, 8
        %s274 = smul.u32 128, %s273
        %s275 = smul.u32 %s274, 2
        %p276 = scmp.lt.s32.totalorder %s270, 24
        %s277 = scalar_select %p276, %s270, 24
        %s278 = smul.addr %s277, 2
        %s279 = smul.addr %s278, 8
        %s280 = scalar_lea.vmem %s0, %s279
        %s281 = smul.u32 8, %s21
        %s282 = ssub.s32 25, %s281
        %p283 = scmp.lt.s32.totalorder %s282, 8
        %s284 = scalar_select %p283, %s282, 8
        %s285 = smul.u32 128, %s284
        %s286 = smul.u32 %s285, 2
        %s287 = smul.u32 8, %s21
        %s288 = ssub.s32 25, %s287
        %p289 = scmp.lt.s32.totalorder %s288, 8
        %s290 = scalar_select %p289, %s288, 8
        %s291 = smul.u32 128, %s290
        %s292 = smul.u32 8, %s21
        %s293 = ssub.s32 25, %s292
        %p294 = scmp.lt.s32.totalorder %s293, 8
        %s295 = scalar_select %p294, %s293, 8
        %s296 = smul.u32 128, %s295
        %v297 = vld [vmem:[%s280] sm:$0xff]
        %v298 = vld [vmem:[%s280 + $0x8] sm:$0xff]
        %v299 = vld [vmem:[%s280 + $0x10] sm:$0xff]
        %v300 = vld [vmem:[%s280 + $0x18] sm:$0xff]
        %v301 = vld [vmem:[%s280 + $0x20] sm:$0xff]
        %v302 = vld [vmem:[%s280 + $0x28] sm:$0xff]
        %v303 = vld [vmem:[%s280 + $0x30] sm:$0xff]
        %v304 = vld [vmem:[%s280 + $0x38] sm:$0xff]
        %v305 = vld [vmem:[%s280 + $0x40] sm:$0xff]
        %v306 = vld [vmem:[%s280 + $0x48] sm:$0xff]
        %v307 = vld [vmem:[%s280 + $0x50] sm:$0xff]
        %v308 = vld [vmem:[%s280 + $0x58] sm:$0xff]
        %v309 = vld [vmem:[%s280 + $0x60] sm:$0xff]
        %v310 = vld [vmem:[%s280 + $0x68] sm:$0xff]
        %v311 = vld [vmem:[%s280 + $0x70] sm:$0xff]
        %v312 = vld [vmem:[%s280 + $0x78] sm:$0xff]
        %v313 = vld [vmem:[%s1] sm:$0xff]
        %v314 = vld [vmem:[%s1 + $0x8] sm:$0xff]
        %v315 = vld [vmem:[%s1 + $0x10] sm:$0xff]
        %v316 = vld [vmem:[%s1 + $0x18] sm:$0xff]
        %v317 = vld [vmem:[%s1 + $0x20] sm:$0xff]
        %v318 = vld [vmem:[%s1 + $0x28] sm:$0xff]
        %v319 = vld [vmem:[%s1 + $0x30] sm:$0xff]
        %v320 = vld [vmem:[%s1 + $0x38] sm:$0xff]
        %v321 = vld [vmem:[%s1 + $0x40] sm:$0xff]
        %v322 = vld [vmem:[%s1 + $0x48] sm:$0xff]
        %v323 = vld [vmem:[%s1 + $0x50] sm:$0xff]
        %v324 = vld [vmem:[%s1 + $0x58] sm:$0xff]
        %v325 = vld [vmem:[%s1 + $0x60] sm:$0xff]
        %v326 = vld [vmem:[%s1 + $0x68] sm:$0xff]
        %v327 = vld [vmem:[%s1 + $0x70] sm:$0xff]
        %v328 = vld [vmem:[%s1 + $0x78] sm:$0xff]
        %v329 = vld [vmem:[%s1 + $0x80] sm:$0xff]
        %v330 = vld [vmem:[%s1 + $0x88] sm:$0xff]
        %v331 = vld [vmem:[%s1 + $0x90] sm:$0xff]
        %v332 = vld [vmem:[%s1 + $0x98] sm:$0xff]
        %v333 = vld [vmem:[%s1 + $0xa0] sm:$0xff]
        %v334 = vld [vmem:[%s1 + $0xa8] sm:$0xff]
        %v335 = vld [vmem:[%s1 + $0xb0] sm:$0xff]
        %v336 = vld [vmem:[%s1 + $0xb8] sm:$0xff]
        %v337 = vld [vmem:[%s1 + $0xc0] sm:$0xff]
        %v338 = vld [vmem:[%s1 + $0xc8] sm:$0xff]
        %v339 = vld [vmem:[%s1 + $0xd0] sm:$0xff]
        %v340 = vld [vmem:[%s1 + $0xd8] sm:$0xff]
        %v341 = vld [vmem:[%s1 + $0xe0] sm:$0xff]
        %v342 = vld [vmem:[%s1 + $0xe8] sm:$0xff]
        %v343 = vld [vmem:[%s1 + $0xf0] sm:$0xff]
        %v344 = vld [vmem:[%s1 + $0xf8] sm:$0xff]
        %v345 = vld [vmem:[%s1 + $0x100] sm:$0xff]
        %v346 = vld [vmem:[%s1 + $0x108] sm:$0xff]
        %v347 = vld [vmem:[%s1 + $0x110] sm:$0xff]
        %v348 = vld [vmem:[%s1 + $0x118] sm:$0xff]
        %v349 = vld [vmem:[%s1 + $0x120] sm:$0xff]
        %v350 = vld [vmem:[%s1 + $0x128] sm:$0xff]
        %v351 = vld [vmem:[%s1 + $0x130] sm:$0xff]
        %v352 = vld [vmem:[%s1 + $0x138] sm:$0xff]
        %v353 = vld [vmem:[%s1 + $0x140] sm:$0xff]
        %v354 = vld [vmem:[%s1 + $0x148] sm:$0xff]
        %v355 = vld [vmem:[%s1 + $0x150] sm:$0xff]
        %v356 = vld [vmem:[%s1 + $0x158] sm:$0xff]
        %v357 = vld [vmem:[%s1 + $0x160] sm:$0xff]
        %v358 = vld [vmem:[%s1 + $0x168] sm:$0xff]
        %v359 = vld [vmem:[%s1 + $0x170] sm:$0xff]
        %v360 = vld [vmem:[%s1 + $0x178] sm:$0xff]
        %v361 = vld [vmem:[%s1 + $0x180] sm:$0xff]
        %v362 = vld [vmem:[%s1 + $0x188] sm:$0xff]
        %v363 = vld [vmem:[%s1 + $0x190] sm:$0xff]
        %v364 = vld [vmem:[%s1 + $0x198] sm:$0xff]
        %v365 = vld [vmem:[%s1 + $0x1a0] sm:$0xff]
        %v366 = vld [vmem:[%s1 + $0x1a8] sm:$0xff]
        %v367 = vld [vmem:[%s1 + $0x1b0] sm:$0xff]
        %v368 = vld [vmem:[%s1 + $0x1b8] sm:$0xff]
        %v369 = vld [vmem:[%s1 + $0x1c0] sm:$0xff]
        %v370 = vld [vmem:[%s1 + $0x1c8] sm:$0xff]
        %v371 = vld [vmem:[%s1 + $0x1d0] sm:$0xff]
        %v372 = vld [vmem:[%s1 + $0x1d8] sm:$0xff]
        %v373 = vld [vmem:[%s1 + $0x1e0] sm:$0xff]
        %v374 = vld [vmem:[%s1 + $0x1e8] sm:$0xff]
        %v375 = vld [vmem:[%s1 + $0x1f0] sm:$0xff]
        %v376 = vld [vmem:[%s1 + $0x1f8] sm:$0xff]
        %v377 = vld [vmem:[%s2] sm:$0x3]
        %v379 = vlaneseq
        %v380 = vshrl.u32 %v379, 7
        %v381 = vsub.s32 0, %v380
        %v382 = vrot.slane %v377, %v381
        %v383 = vlaneseq
        %v384 = vshrl.u32 %v383, 7
        %v385 = vsub.s32 1, %v384
        %v386 = vrot.slane %v377, %v385
        %389 = vmatprep.subr.mxu0 %v314
        %390 = vmatpush1.msra.mxu0 %v313
        %391 = vmatprep.subr.mxu0 %v316
        %392 = vmatpush1.msra.mxu0 %v315
        %393 = vmatprep.subr.mxu0 %v318
        %394 = vmatpush1.msra.mxu0 %v317
        %395 = vmatprep.subr.mxu0 %v320
        %396 = vmatpush1.msra.mxu0 %v319
        %397 = vmatprep.subr.mxu0 %v322
        %398 = vmatpush1.msra.mxu0 %v321
        %399 = vmatprep.subr.mxu0 %v324
        %400 = vmatpush1.msra.mxu0 %v323
        %401 = vmatprep.subr.mxu0 %v326
        %402 = vmatpush1.msra.mxu0 %v325
        %403 = vmatprep.subr.mxu0 %v328
        %404 = vmatpush1.msra.mxu0 %v327
        %405 = vmatprep.subr.mxu0 %v330
        %406 = vmatpush1.msra.mxu0 %v329
        %407 = vmatprep.subr.mxu0 %v332
        %408 = vmatpush1.msra.mxu0 %v331
        %409 = vmatprep.subr.mxu0 %v334
        %410 = vmatpush1.msra.mxu0 %v333
        %411 = vmatprep.subr.mxu0 %v336
        %412 = vmatpush1.msra.mxu0 %v335
        %413 = vmatprep.subr.mxu0 %v338
        %414 = vmatpush1.msra.mxu0 %v337
        %415 = vmatprep.subr.mxu0 %v340
        %416 = vmatpush1.msra.mxu0 %v339
        %417 = vmatprep.subr.mxu0 %v342
        %418 = vmatpush1.msra.mxu0 %v341
        %419 = vmatprep.subr.mxu0 %v344
        %420 = vmatpush1.msra.mxu0 %v343
        %421 = vmatprep.subr.mxu0 %v346
        %422 = vmatpush1.msra.mxu0 %v345
        %423 = vmatprep.subr.mxu0 %v348
        %424 = vmatpush1.msra.mxu0 %v347
        %425 = vmatprep.subr.mxu0 %v350
        %426 = vmatpush1.msra.mxu0 %v349
        %427 = vmatprep.subr.mxu0 %v352
        %428 = vmatpush1.msra.mxu0 %v351
        %429 = vmatprep.subr.mxu0 %v354
        %430 = vmatpush1.msra.mxu0 %v353
        %431 = vmatprep.subr.mxu0 %v356
        %432 = vmatpush1.msra.mxu0 %v355
        %433 = vmatprep.subr.mxu0 %v358
        %434 = vmatpush1.msra.mxu0 %v357
        %435 = vmatprep.subr.mxu0 %v360
        %436 = vmatpush1.msra.mxu0 %v359
        %437 = vmatprep.subr.mxu0 %v362
        %438 = vmatpush1.msra.mxu0 %v361
        %439 = vmatprep.subr.mxu0 %v364
        %440 = vmatpush1.msra.mxu0 %v363
        %441 = vmatprep.subr.mxu0 %v366
        %442 = vmatpush1.msra.mxu0 %v365
        %443 = vmatprep.subr.mxu0 %v368
        %444 = vmatpush1.msra.mxu0 %v367
        %445 = vmatprep.subr.mxu0 %v370
        %446 = vmatpush1.msra.mxu0 %v369
        %447 = vmatprep.subr.mxu0 %v372
        %448 = vmatpush1.msra.mxu0 %v371
        %449 = vmatprep.subr.mxu0 %v374
        %450 = vmatpush1.msra.mxu0 %v373
        %451 = vmatprep.subr.mxu0 %v376
        %452 = vmatpush1.msra.mxu0 %v375
        %453 = vmatprep.mubr.f32.mxu0 %v298
        %454 = vmatmul.mubr.f32.gmra.mrb[0].mxu0 %v297
        %v455 = vpop.f32.mrb[0].mxu0
        %v456 = vadd.f32 %v382, %v455
        %v457 = vpop.f32.mrb[0].mxu0
        %v458 = vadd.f32 %v386, %v457
        %459 = vmatprep.mubr.f32.mxu0 %v300
        %460 = vmatmul.mubr.f32.gmra.mrb[0].mxu0 %v299
        %v461 = vpop.f32.mrb[0].mxu0
        %v462 = vadd.f32 %v382, %v461
        %v463 = vpop.f32.mrb[0].mxu0
        %v464 = vadd.f32 %v386, %v463
        %465 = vmatprep.mubr.f32.mxu0 %v302
        %466 = vmatmul.mubr.f32.gmra.mrb[0].mxu0 %v301
        %v467 = vpop.f32.mrb[0].mxu0
        %v468 = vadd.f32 %v382, %v467
        %v469 = vpop.f32.mrb[0].mxu0
        %v470 = vadd.f32 %v386, %v469
        %471 = vmatprep.mubr.f32.mxu0 %v304
        %472 = vmatmul.mubr.f32.gmra.mrb[0].mxu0 %v303
        %v473 = vpop.f32.mrb[0].mxu0
        %v474 = vadd.f32 %v382, %v473
        %v475 = vpop.f32.mrb[0].mxu0
        %v476 = vadd.f32 %v386, %v475
        %477 = vmatprep.mubr.f32.mxu0 %v306
        %478 = vmatmul.mubr.f32.gmra.mrb[0].mxu0 %v305
        %v479 = vpop.f32.mrb[0].mxu0
        %v480 = vadd.f32 %v382, %v479
        %v481 = vpop.f32.mrb[0].mxu0
        %v482 = vadd.f32 %v386, %v481
        %483 = vmatprep.mubr.f32.mxu0 %v308
        %484 = vmatmul.mubr.f32.gmra.mrb[0].mxu0 %v307
        %v485 = vpop.f32.mrb[0].mxu0
        %v486 = vadd.f32 %v382, %v485
        %v487 = vpop.f32.mrb[0].mxu0
        %v488 = vadd.f32 %v386, %v487
        %489 = vmatprep.mubr.f32.mxu0 %v310
        %490 = vmatmul.mubr.f32.gmra.mrb[0].mxu0 %v309
        %v491 = vpop.f32.mrb[0].mxu0
        %v492 = vadd.f32 %v382, %v491
        %v493 = vpop.f32.mrb[0].mxu0
        %v494 = vadd.f32 %v386, %v493
        %495 = vmatprep.mubr.f32.mxu0 %v312
        %496 = vmatmul.mubr.f32.gmra.mrb[0].mxu0 %v311
        %v497 = vpop.f32.mrb[0].mxu0
        %v498 = vadd.f32 %v382, %v497
        %v499 = vpop.f32.mrb[0].mxu0
        %v500 = vadd.f32 %v386, %v499
        %501 = vdwg.mxu0
        %vm502 = vcmask 15360
        %503 = vst.msk [vmem:[%s262] sm:$0xff] %vm502, %v458
        %504 = vst.msk [vmem:[%s262 + $0x8] sm:$0xff] %vm502, %v464
        %505 = vst.msk [vmem:[%s262 + $0x10] sm:$0xff] %vm502, %v470
        %506 = vst.msk [vmem:[%s262 + $0x18] sm:$0xff] %vm502, %v476
        %507 = vst.msk [vmem:[%s262 + $0x20] sm:$0xff] %vm502, %v482
        %508 = vst.msk [vmem:[%s262 + $0x28] sm:$0xff] %vm502, %v488
        %509 = vst.msk [vmem:[%s262 + $0x30] sm:$0xff] %vm502, %v494
        %510 = vst.msk [vmem:[%s262 + $0x38] sm:$0xff] %vm502, %v500
        %v511 = vmax.f32 %v456, 0.0
        %v512 = vmax.f32 %v462, 0.0
        %v513 = vmax.f32 %v468, 0.0
        %v514 = vmax.f32 %v474, 0.0
        %v515 = vmax.f32 %v480, 0.0
        %v516 = vmax.f32 %v486, 0.0
        %v517 = vmax.f32 %v492, 0.0
        %v518 = vmax.f32 %v498, 0.0
        %v519 = vld [vmem:[%s3] sm:$0xff]
        %v520 = vld [vmem:[%s3 + $0x8] sm:$0xff]
        %v521 = vld [vmem:[%s3 + $0x10] sm:$0xff]
        %v522 = vld [vmem:[%s3 + $0x18] sm:$0xff]
        %v523 = vld [vmem:[%s3 + $0x20] sm:$0xff]
        %v524 = vld [vmem:[%s3 + $0x28] sm:$0xff]
        %v525 = vld [vmem:[%s3 + $0x30] sm:$0xff]
        %v526 = vld [vmem:[%s3 + $0x38] sm:$0xff]
        %v527 = vld [vmem:[%s3 + $0x40] sm:$0xff]
        %v528 = vld [vmem:[%s3 + $0x48] sm:$0xff]
        %v529 = vld [vmem:[%s3 + $0x50] sm:$0xff]
        %v530 = vld [vmem:[%s3 + $0x58] sm:$0xff]
        %v531 = vld [vmem:[%s3 + $0x60] sm:$0xff]
        %v532 = vld [vmem:[%s3 + $0x68] sm:$0xff]
        %v533 = vld [vmem:[%s3 + $0x70] sm:$0xff]
        %v534 = vld [vmem:[%s3 + $0x78] sm:$0xff]
        %v535 = vld [vmem:[%s4] sm:$0x1]
        %v537 = vlaneseq
        %v538 = vshrl.u32 %v537, 7
        %v539 = vsub.s32 0, %v538
        %v540 = vrot.slane %v535, %v539
        %542 = vmatprep.subr.mxu0 0.0
        %543 = vmatpush1.msra.mxu0 %v519
        %544 = vmatprep.subr.mxu0 0.0
        %545 = vmatpush1.msra.mxu0 %v520
        %546 = vmatprep.subr.mxu0 0.0
        %547 = vmatpush1.msra.mxu0 %v521
        %548 = vmatprep.subr.mxu0 0.0
        %549 = vmatpush1.msra.mxu0 %v522
        %550 = vmatprep.subr.mxu0 0.0
        %551 = vmatpush1.msra.mxu0 %v523
        %552 = vmatprep.subr.mxu0 0.0
        %553 = vmatpush1.msra.mxu0 %v524
        %554 = vmatprep.subr.mxu0 0.0
        %555 = vmatpush1.msra.mxu0 %v525
        %556 = vmatprep.subr.mxu0 0.0
        %557 = vmatpush1.msra.mxu0 %v526
        %558 = vmatprep.subr.mxu0 0.0
        %559 = vmatpush1.msra.mxu0 %v527
        %560 = vmatprep.subr.mxu0 0.0
        %561 = vmatpush1.msra.mxu0 %v528
        %562 = vmatprep.subr.mxu0 0.0
        %563 = vmatpush1.msra.mxu0 %v529
        %564 = vmatprep.subr.mxu0 0.0
        %565 = vmatpush1.msra.mxu0 %v530
        %566 = vmatprep.subr.mxu0 0.0
        %567 = vmatpush1.msra.mxu0 %v531
        %568 = vmatprep.subr.mxu0 0.0
        %569 = vmatpush1.msra.mxu0 %v532
        %570 = vmatprep.subr.mxu0 0.0
        %571 = vmatpush1.msra.mxu0 %v533
        %572 = vmatprep.subr.mxu0 0.0
        %573 = vmatpush1.msra.mxu0 %v534
        %574 = vmatprep.subr.mxu0 0.0
        %575 = vmatpush1.msra.mxu0 0.0
        %576 = vmatprep.subr.mxu0 0.0
        %577 = vmatpush1.msra.mxu0 0.0
        %578 = vmatprep.subr.mxu0 0.0
        %579 = vmatpush1.msra.mxu0 0.0
        %580 = vmatprep.subr.mxu0 0.0
        %581 = vmatpush1.msra.mxu0 0.0
        %582 = vmatprep.subr.mxu0 0.0
        %583 = vmatpush1.msra.mxu0 0.0
        %584 = vmatprep.subr.mxu0 0.0
        %585 = vmatpush1.msra.mxu0 0.0
        %586 = vmatprep.subr.mxu0 0.0
        %587 = vmatpush1.msra.mxu0 0.0
        %588 = vmatprep.subr.mxu0 0.0
        %589 = vmatpush1.msra.mxu0 0.0
        %590 = vmatprep.subr.mxu0 0.0
        %591 = vmatpush1.msra.mxu0 0.0
        %592 = vmatprep.subr.mxu0 0.0
        %593 = vmatpush1.msra.mxu0 0.0
        %594 = vmatprep.subr.mxu0 0.0
        %595 = vmatpush1.msra.mxu0 0.0
        %596 = vmatprep.subr.mxu0 0.0
        %597 = vmatpush1.msra.mxu0 0.0
        %598 = vmatprep.subr.mxu0 0.0
        %599 = vmatpush1.msra.mxu0 0.0
        %600 = vmatprep.subr.mxu0 0.0
        %601 = vmatpush1.msra.mxu0 0.0
        %602 = vmatprep.subr.mxu0 0.0
        %603 = vmatpush1.msra.mxu0 0.0
        %604 = vmatprep.subr.mxu0 0.0
        %605 = vmatpush1.msra.mxu0 0.0
        %606 = vmatprep.mubr.f32.mxu0 0.0
        %607 = vmatmul.mubr.f32.gmra.mrb[0].mxu0 %v511
        %v608 = vpop.f32.mrb[0].mxu0
        %v609 = vadd.f32 %v540, %v608
        %v610 = vpop.f32.mrb[0].mxu0
        %611 = vmatprep.mubr.f32.mxu0 0.0
        %612 = vmatmul.mubr.f32.gmra.mrb[0].mxu0 %v512
        %v613 = vpop.f32.mrb[0].mxu0
        %v614 = vadd.f32 %v540, %v613
        %v615 = vpop.f32.mrb[0].mxu0
        %616 = vmatprep.mubr.f32.mxu0 0.0
        %617 = vmatmul.mubr.f32.gmra.mrb[0].mxu0 %v513
        %v618 = vpop.f32.mrb[0].mxu0
        %v619 = vadd.f32 %v540, %v618
        %v620 = vpop.f32.mrb[0].mxu0
        %621 = vmatprep.mubr.f32.mxu0 0.0
        %622 = vmatmul.mubr.f32.gmra.mrb[0].mxu0 %v514
        %v623 = vpop.f32.mrb[0].mxu0
        %v624 = vadd.f32 %v540, %v623
        %v625 = vpop.f32.mrb[0].mxu0
        %626 = vmatprep.mubr.f32.mxu0 0.0
        %627 = vmatmul.mubr.f32.gmra.mrb[0].mxu0 %v515
        %v628 = vpop.f32.mrb[0].mxu0
        %v629 = vadd.f32 %v540, %v628
        %v630 = vpop.f32.mrb[0].mxu0
        %631 = vmatprep.mubr.f32.mxu0 0.0
        %632 = vmatmul.mubr.f32.gmra.mrb[0].mxu0 %v516
        %v633 = vpop.f32.mrb[0].mxu0
        %v634 = vadd.f32 %v540, %v633
        %v635 = vpop.f32.mrb[0].mxu0
        %636 = vmatprep.mubr.f32.mxu0 0.0
        %637 = vmatmul.mubr.f32.gmra.mrb[0].mxu0 %v517
        %v638 = vpop.f32.mrb[0].mxu0
        %v639 = vadd.f32 %v540, %v638
        %v640 = vpop.f32.mrb[0].mxu0
        %641 = vmatprep.mubr.f32.mxu0 0.0
        %642 = vmatmul.mubr.f32.gmra.mrb[0].mxu0 %v518
        %v643 = vpop.f32.mrb[0].mxu0
        %v644 = vadd.f32 %v540, %v643
        %v645 = vpop.f32.mrb[0].mxu0
        %646 = vdwg.mxu0
        %v647 = vtanh.pop %v609
        %v648 = vtanh.pop %v614
        %v649 = vtanh.pop %v619
        %v650 = vtanh.pop %v624
        %v651 = vtanh.pop %v629
        %v652 = vtanh.pop %v634
        %v653 = vtanh.pop %v639
        %v654 = vtanh.pop %v644
        %655 = vst [vmem:[%s269] sm:$0xff] %v647
        %656 = vst [vmem:[%s269 + $0x8] sm:$0xff] %v648
        %657 = vst [vmem:[%s269 + $0x10] sm:$0xff] %v649
        %658 = vst [vmem:[%s269 + $0x18] sm:$0xff] %v650
        %659 = vst [vmem:[%s269 + $0x20] sm:$0xff] %v651
        %660 = vst [vmem:[%s269 + $0x28] sm:$0xff] %v652
        %661 = vst [vmem:[%s269 + $0x30] sm:$0xff] %v653
        %662 = vst [vmem:[%s269 + $0x38] sm:$0xff] %v654
        %s663 = sand.u32 %s139, 1
        %s664 = sand.u32 %s139, 1
        %s665 = smul.addr %s664, 64
        %s666 = scalar_lea.vmem [#allocation2], %s665
        %s667 = sand.u32 %s165, 1
        %s668 = scalar_lea.sflag [#allocation4], %s667
        %s669 = sand.u32 %s165, 1
        %s670 = smul.addr %s669, 64
        %s671 = scalar_lea.vmem [#allocation3], %s670
        // Predicated region
        $region41: #{tpu_custom_call.1} parent=39 // pred_check
          %p672 = pneg %p149
        $region42: #{tpu_custom_call.1} parent=39 // pred_check_branch
          %674 = sbr.rel (%p672) target = $region44
        $region43: #{tpu_custom_call.1} parent=39 // pred_region
          %s675 = smul.u32 8, %s21
          %s676 = ssub.s32 25, %s675
          %p677 = scmp.lt.s32.totalorder %s676, 8
          %s678 = scalar_select %p677, %s676, 8
          %s679 = smul.u32 128, %s678
          %p680 = scmp.ne.s32.totalorder 0, %s679
          %s681 = smul.addr %s675, 8
          %s682 = scalar_lea.vmem %s5, %s681
          // Predicated region
          $region45: #{tpu_custom_call.1} parent=43 // pred_check
            %p683 = pneg %p680
          $region46: #{tpu_custom_call.1} parent=43 // pred_check_branch
            %685 = sbr.rel (%p683) target = $region48
          $region47: #{tpu_custom_call.1} parent=43 // pred_region
            // Predicated region
            $region49: #{tpu_custom_call.1} parent=47 // pred_check
              _
            $region50: #{tpu_custom_call.1} parent=47 // pred_check_branch
              %687 = sbr.rel (0) target = $region52
            $region51: #{tpu_custom_call.1} parent=47 // pred_region
              // Predicated region
              $region71: #{tpu_custom_call.1} parent=51 // pred_check
                _
              $region72: #{tpu_custom_call.1} parent=51 // pred_check_branch
                %750 = sbr.rel (0) target = $region74
              $region73: #{tpu_custom_call.1} parent=51 // pred_region
                %s751 = sshrl.u32 %s678, 3
                // While loop
                $region75: #{tpu_custom_call.1} parent=73 // loop_pre_header
                  _
                $region76: #{tpu_custom_call.1} parent=73 // loop_header
                  %s753 = sphi 0, %s755
                  %p754 = scmp.ge.s32.totalorder %s753, %s751
                  %s758 = sphi 0, %s779
                  %s759 = sphi %s666, %s782
                  %s760 = sphi %s682, %s783
                $region77: #{tpu_custom_call.1} parent=73 // loop_header_branch
                  %757 = sbr.rel (%p754) target = $region81
                $region78: #{tpu_custom_call.1} parent=73 // loop_body
                  %v761 = vld [vmem:[%s759] sm:$0xff]
                  %762 = vst [vmem:[%s760] sm:$0xff] %v761
                  %v763 = vld [vmem:[%s759 + $0x8] sm:$0xff]
                  %764 = vst [vmem:[%s760 + $0x8] sm:$0xff] %v763
                  %v765 = vld [vmem:[%s759 + $0x10] sm:$0xff]
                  %766 = vst [vmem:[%s760 + $0x10] sm:$0xff] %v765
                  %v767 = vld [vmem:[%s759 + $0x18] sm:$0xff]
                  %768 = vst [vmem:[%s760 + $0x18] sm:$0xff] %v767
                  %v769 = vld [vmem:[%s759 + $0x20] sm:$0xff]
                  %770 = vst [vmem:[%s760 + $0x20] sm:$0xff] %v769
                  %v771 = vld [vmem:[%s759 + $0x28] sm:$0xff]
                  %772 = vst [vmem:[%s760 + $0x28] sm:$0xff] %v771
                  %v773 = vld [vmem:[%s759 + $0x30] sm:$0xff]
                  %774 = vst [vmem:[%s760 + $0x30] sm:$0xff] %v773
                  %v775 = vld [vmem:[%s759 + $0x38] sm:$0xff]
                  %776 = vst [vmem:[%s760 + $0x38] sm:$0xff] %v775
                  %s777 = sadd.s32 1, %s758
                  %p778 = scmp.ge.s32.totalorder %s777, %s751
                  %s779 = scalar_select %p778, 0, %s777
                  %s780 = smul.u32 %s779, 64
                  %s781 = smul.u32 %s779, 64
                  %s782 = scalar_lea.vmem %s666, %s780 [#allocation2]
                  %s783 = scalar_lea.vmem %s682, %s781
                $region79: #{tpu_custom_call.1} parent=73 // loop_footer
                  %s755 = sadd.s32 %s753, 1
                $region80: #{tpu_custom_call.1} parent=73 // loop_footer_branch
                  %752 = sbr.rel target = $region76
                $region81: #{tpu_custom_call.1} parent=73 // loop_exit
                  _
                %s784 = sshrl.u32 %s678, 3
                %s785 = sand.u32 %s678, 7
                %s786 = smul.u32 %s784, 8
                %s787 = smul.u32 8, %s786
                %s788 = scalar_lea.vmem %s666, %s787 [#allocation2]
                %s789 = smul.u32 8, %s786
                %s790 = scalar_lea.vmem %s682, %s789
                // While loop
                $region82: #{tpu_custom_call.1} parent=73 // loop_pre_header
                  _
                $region83: #{tpu_custom_call.1} parent=73 // loop_header
                  %s792 = sphi 0, %s794
                  %p793 = scmp.ge.s32.totalorder %s792, %s785
                  %s797 = sphi 0, %s804
                  %s798 = sphi %s788, %s807
                  %s799 = sphi %s790, %s808
                $region84: #{tpu_custom_call.1} parent=73 // loop_header_branch
                  %796 = sbr.rel (%p793) target = $region88
                $region85: #{tpu_custom_call.1} parent=73 // loop_body
                  %v800 = vld [vmem:[%s798] sm:$0xff]
                  %801 = vst [vmem:[%s799] sm:$0xff] %v800
                  %s802 = sadd.s32 1, %s797
                  %p803 = scmp.ge.s32.totalorder %s802, %s785
                  %s804 = scalar_select %p803, 0, %s802
                  %s805 = smul.u32 %s804, 8
                  %s806 = smul.u32 %s804, 8
                  %s807 = scalar_lea.vmem %s788, %s805 [#allocation2]
                  %s808 = scalar_lea.vmem %s790, %s806
                $region86: #{tpu_custom_call.1} parent=73 // loop_footer
                  %s794 = sadd.s32 %s792, 1
                $region87: #{tpu_custom_call.1} parent=73 // loop_footer_branch
                  %791 = sbr.rel target = $region83
                $region88: #{tpu_custom_call.1} parent=73 // loop_exit
                  _
              $region74: #{tpu_custom_call.1} parent=51 // pred_fallthru
                _
              // Predicated region
              $region89: #{tpu_custom_call.1} parent=51 // pred_check
                _
              $region90: #{tpu_custom_call.1} parent=51 // pred_check_branch
                %810 = sbr.rel target = $region92
              $region91: #{tpu_custom_call.1} parent=51 // pred_region
                _
              $region92: #{tpu_custom_call.1} parent=51 // pred_fallthru
                _
            $region52: #{tpu_custom_call.1} parent=47 // pred_fallthru
              _
            // Predicated region
            $region53: #{tpu_custom_call.1} parent=47 // pred_check
              _
            $region54: #{tpu_custom_call.1} parent=47 // pred_check_branch
              %689 = sbr.rel target = $region56
            $region55: #{tpu_custom_call.1} parent=47 // pred_region
              %s691 = sshrl.u32 %s678, 3
              // While loop
              $region57: #{tpu_custom_call.1} parent=55 // loop_pre_header
                _
              $region58: #{tpu_custom_call.1} parent=55 // loop_header
                %s693 = sphi 0, %s695
                %p694 = scmp.ge.s32.totalorder %s693, %s691
                %s698 = sphi 0, %s719
                %s699 = sphi %s666, %s722
                %s700 = sphi %s682, %s723
              $region59: #{tpu_custom_call.1} parent=55 // loop_header_branch
                %697 = sbr.rel (%p694) target = $region63
              $region60: #{tpu_custom_call.1} parent=55 // loop_body
                %v701 = vld [vmem:[%s699] sm:$0xff]
                %702 = vst [vmem:[%s700] sm:$0xff] %v701
                %v703 = vld [vmem:[%s699 + $0x8] sm:$0xff]
                %704 = vst [vmem:[%s700 + $0x8] sm:$0xff] %v703
                %v705 = vld [vmem:[%s699 + $0x10] sm:$0xff]
                %706 = vst [vmem:[%s700 + $0x10] sm:$0xff] %v705
                %v707 = vld [vmem:[%s699 + $0x18] sm:$0xff]
                %708 = vst [vmem:[%s700 + $0x18] sm:$0xff] %v707
                %v709 = vld [vmem:[%s699 + $0x20] sm:$0xff]
                %710 = vst [vmem:[%s700 + $0x20] sm:$0xff] %v709
                %v711 = vld [vmem:[%s699 + $0x28] sm:$0xff]
                %712 = vst [vmem:[%s700 + $0x28] sm:$0xff] %v711
                %v713 = vld [vmem:[%s699 + $0x30] sm:$0xff]
                %714 = vst [vmem:[%s700 + $0x30] sm:$0xff] %v713
                %v715 = vld [vmem:[%s699 + $0x38] sm:$0xff]
                %716 = vst [vmem:[%s700 + $0x38] sm:$0xff] %v715
                %s717 = sadd.s32 1, %s698
                %p718 = scmp.ge.s32.totalorder %s717, %s691
                %s719 = scalar_select %p718, 0, %s717
                %s720 = smul.u32 %s719, 64
                %s721 = smul.u32 %s719, 64
                %s722 = scalar_lea.vmem %s666, %s720 [#allocation2]
                %s723 = scalar_lea.vmem %s682, %s721
              $region61: #{tpu_custom_call.1} parent=55 // loop_footer
                %s695 = sadd.s32 %s693, 1
              $region62: #{tpu_custom_call.1} parent=55 // loop_footer_branch
                %692 = sbr.rel target = $region58
              $region63: #{tpu_custom_call.1} parent=55 // loop_exit
                _
              %s724 = sshrl.u32 %s678, 3
              %s725 = sand.u32 %s678, 7
              %s726 = smul.u32 %s724, 8
              %s727 = smul.u32 8, %s726
              %s728 = scalar_lea.vmem %s666, %s727 [#allocation2]
              %s729 = smul.u32 8, %s726
              %s730 = scalar_lea.vmem %s682, %s729
              // While loop
              $region64: #{tpu_custom_call.1} parent=55 // loop_pre_header
                _
              $region65: #{tpu_custom_call.1} parent=55 // loop_header
                %s732 = sphi 0, %s734
                %p733 = scmp.ge.s32.totalorder %s732, %s725
                %s737 = sphi 0, %s744
                %s738 = sphi %s728, %s747
                %s739 = sphi %s730, %s748
              $region66: #{tpu_custom_call.1} parent=55 // loop_header_branch
                %736 = sbr.rel (%p733) target = $region70
              $region67: #{tpu_custom_call.1} parent=55 // loop_body
                %v740 = vld [vmem:[%s738] sm:$0xff]
                %741 = vst [vmem:[%s739] sm:$0xff] %v740
                %s742 = sadd.s32 1, %s737
                %p743 = scmp.ge.s32.totalorder %s742, %s725
                %s744 = scalar_select %p743, 0, %s742
                %s745 = smul.u32 %s744, 8
                %s746 = smul.u32 %s744, 8
                %s747 = scalar_lea.vmem %s728, %s745 [#allocation2]
                %s748 = scalar_lea.vmem %s730, %s746
              $region68: #{tpu_custom_call.1} parent=55 // loop_footer
                %s734 = sadd.s32 %s732, 1
              $region69: #{tpu_custom_call.1} parent=55 // loop_footer_branch
                %731 = sbr.rel target = $region65
              $region70: #{tpu_custom_call.1} parent=55 // loop_exit
                _
            $region56: #{tpu_custom_call.1} parent=47 // pred_fallthru
              _
          $region48: #{tpu_custom_call.1} parent=43 // pred_fallthru
            _
          %811 = vnop
        $region44: #{tpu_custom_call.1} parent=39 // pred_fallthru
          _
        // Predicated region
        $region93: #{tpu_custom_call.1} parent=39 // pred_check
          %p812 = pneg %p175
        $region94: #{tpu_custom_call.1} parent=39 // pred_check_branch
          %814 = sbr.rel (%p812) target = $region96
        $region95: #{tpu_custom_call.1} parent=39 // pred_region
          %s815 = smul.u32 8, %s21
          %s816 = ssub.s32 25, %s815
          %p817 = scmp.lt.s32.totalorder %s816, 8
          %s818 = scalar_select %p817, %s816, 8
          %s819 = smul.u32 128, %s818
          %s821 = ssub.s32 1024, %s819
          %822 = vsyncadd %s668, %s821
          %p823 = scmp.ne.s32.totalorder 0, %s819
          %s824 = smul.addr %s815, 128
          %s825 = scalar_lea.hbm %s6, %s824
          %s826 = smul.u32 8, %s818
          %s827 = sshll.u32 %s671, 4
          %s828 = int_to_ptr.vmem [resolvable:$true] %s827
          %s829 = sshll.u32 %s826, 4
          %833 = dma.vmem_to_hbm [thread:$0]  (%p823), %s828, %s829, %s825, %s668, 128, 128, 8
        $region96: #{tpu_custom_call.1} parent=39 // pred_fallthru
          _
      $region40: #{tpu_custom_call.1} parent=5 // pred_fallthru
        _
      %p834 = scmp.le.s32.totalorder 2, %s16
      // Predicated region
      $region97: #{tpu_custom_call.1} parent=5 // pred_check
        %p835 = pneg %p834
      $region98: #{tpu_custom_call.1} parent=5 // pred_check_branch
        %837 = sbr.rel (%p835) target = $region100
      $region99: #{tpu_custom_call.1} parent=5 // pred_region
        %s838 = ssub.s32 %s16, 2
        // Predicated region
        $region101: #{tpu_custom_call.1} parent=99 // pred_check
          %p839 = pneg %p155
        $region102: #{tpu_custom_call.1} parent=99 // pred_check_branch
          %841 = sbr.rel (%p839) target = $region104
        $region103: #{tpu_custom_call.1} parent=99 // pred_region
          %s842 = sand.u32 %s140, 1
          %s843 = sand.u32 %s140, 1
          %s844 = smul.addr %s843, 64
          %s845 = scalar_lea.vmem [#allocation2], %s844
        $region104: #{tpu_custom_call.1} parent=99 // pred_fallthru
          _
        // Predicated region
        $region105: #{tpu_custom_call.1} parent=99 // pred_check
          %p846 = pneg %p181
        $region106: #{tpu_custom_call.1} parent=99 // pred_check_branch
          %848 = sbr.rel (%p846) target = $region108
        $region107: #{tpu_custom_call.1} parent=99 // pred_region
          %s849 = sand.u32 %s166, 1
          %s850 = scalar_lea.sflag [#allocation4], %s849
          %s851 = sand.u32 %s166, 1
          %s852 = smul.addr %s851, 64
          %s853 = scalar_lea.vmem [#allocation3], %s852
          %854 = dma.done %s850, 1024
        $region108: #{tpu_custom_call.1} parent=99 // pred_fallthru
          _
      $region100: #{tpu_custom_call.1} parent=5 // pred_fallthru
        _
    $region6: #{tpu_custom_call.1} parent=1 // loop_footer
      %s20 = sadd.s32 1, %s16
    $region7: #{tpu_custom_call.1} parent=1 // loop_footer_branch
      %15 = sbr.rel target = $region3
    $region8: #{tpu_custom_call.1} parent=1 // loop_exit
      _
    %855 = vsyncpa [#allocation4], 1
    %s856 = scalar_lea.sflag [#allocation4], 1
    %857 = vsyncpa %s856, 1

</llo_original>
